<compile_context>
chip_gen: v7x
topology: tpu7x:2x2x1
jax: 0.10.0
libtpu: 0.0.40
codegen_flags: <defaults>
</compile_context>

<pallas_src>
import functools

import jax
import jax.numpy as jnp
from jax.experimental import pallas as pl
from jax.experimental.pallas import tpu as pltpu

_LANE = 128
_VMEM_LIMIT_BYTES = 32 * 1024 * 1024  # raises v5e's 16 MiB scoped default, safe on v6e/v7x


def _make_divisible(v, divisor, min_value=None):
    if min_value is None:
        min_value = divisor
    new_v = max(min_value, int(v + divisor / 2) // divisor * divisor)
    if new_v < 0.9 * v:
        new_v += divisor
    return new_v


def _pick_hw_tile(hw_pad, c, itemsize):
    """Largest lane tile (multiple of 128) that divides hw_pad and keeps the
    double-buffered in+out blocks of the scaling pass under ~8 MiB."""
    budget = 8 * 1024 * 1024
    for t in (2048, 1024, 512, 256, 128):
        if hw_pad % t == 0 and 4 * c * t * itemsize <= budget:
            return t
    return 128  # hw_pad is always a multiple of 128


# ---------------- pass 1: global spatial pooling (sum), tiled over HW --------
def _pool_kernel(x_ref, sum_ref):
    # x_ref: (1, C, tile_hw); sum_ref: (1, C, 1) f32, resident across HW tiles.
    @pl.when(pl.program_id(1) == 0)
    def _():
        sum_ref[...] = jnp.zeros_like(sum_ref)

    sum_ref[...] += jnp.sum(x_ref[...], axis=2, keepdims=True, dtype=jnp.float32)


# ---------------- pass 2: fc1 -> ReLU -> fc2 -> hard_sigmoid, batched over B -
def _fc_kernel(pooled_ref, w1t_ref, b1_ref, w2t_ref, b2_ref, scale_ref, *, inv_hw):
    # pooled_ref: (B, C) f32 spatial sums; weights are tiny, whole-array blocks.
    p = pooled_ref[...] * inv_hw                                   # mean over HxW
    h = jnp.dot(p, w1t_ref[...], preferred_element_type=jnp.float32) + b1_ref[...]
    h = jnp.maximum(h, 0.0)                                        # ReLU
    s = jnp.dot(h, w2t_ref[...], preferred_element_type=jnp.float32) + b2_ref[...]
    scale_ref[...] = jnp.clip(s + 3.0, 0.0, 6.0) * (1.0 / 6.0)     # hard_sigmoid


# ---------------- pass 3: broadcast scale over spatial positions -------------
def _scale_kernel(x_ref, s_ref, o_ref):
    # x_ref/o_ref: (1, C, tile_hw); s_ref: (1, C, 1) f32.
    x = x_ref[...]
    s = s_ref[...].astype(x.dtype)      # keep elementwise math in native dtype
    o_ref[...] = (x * s).astype(o_ref.dtype)


def squeeze_excitation(x, w1, b1, w2, b2):
    """x: (B, C, H, W); w1: (Cs, C); b1: (Cs,); w2: (C, Cs); b2: (C,)."""
    B, C, H, W = x.shape
    Cs = w1.shape[0]
    HW = H * W
    HW_pad = ((HW + _LANE - 1) // _LANE) * _LANE

    x_flat = x.reshape(B, C, HW)
    if HW_pad != HW:
        # lane-dense layout: pad spatial dim once so every tile is a multiple of 128
        x_flat = jnp.pad(x_flat, ((0, 0), (0, 0), (0, HW_pad - HW)))

    tile_hw = _pick_hw_tile(HW_pad, C, x.dtype.itemsize)
    n_hw = HW_pad // tile_hw

    # ---- pass 1: pooled spatial sums (padded zeros do not affect the sum) ----
    pooled = pl.pallas_call(
        _pool_kernel,
        out_shape=jax.ShapeDtypeStruct((B, C, 1), jnp.float32),
        grid_spec=pltpu.PrefetchScalarGridSpec(
            num_scalar_prefetch=0,
            grid=(B, n_hw),
            in_specs=[pl.BlockSpec((1, C, tile_hw), lambda b, h: (b, 0, h))],
            out_specs=pl.BlockSpec((1, C, 1), lambda b, h: (b, 0, 0)),
        ),
        compiler_params=pltpu.CompilerParams(
            dimension_semantics=("parallel", "arbitrary"),
            vmem_limit_bytes=_VMEM_LIMIT_BYTES),
    )(x_flat)

    # ---- pass 2: tiny FCs + hard_sigmoid, one call batched over all B --------
    scale = pl.pallas_call(
        functools.partial(_fc_kernel, inv_hw=1.0 / HW),
        out_shape=jax.ShapeDtypeStruct((B, C), jnp.float32),
    )(pooled.reshape(B, C), w1.T, b1.reshape(1, Cs), w2.T, b2.reshape(1, C))

    # ---- pass 3: scale the activations, fully parallel tiles -----------------
    out = pl.pallas_call(
        _scale_kernel,
        out_shape=jax.ShapeDtypeStruct((B, C, HW_pad), x.dtype),
        grid_spec=pltpu.PrefetchScalarGridSpec(
            num_scalar_prefetch=0,
            grid=(B, n_hw),
            in_specs=[
                pl.BlockSpec((1, C, tile_hw), lambda b, h: (b, 0, h)),
                pl.BlockSpec((1, C, 1), lambda b, h: (b, 0, 0)),
            ],
            out_specs=pl.BlockSpec((1, C, tile_hw), lambda b, h: (b, 0, h)),
        ),
        compiler_params=pltpu.CompilerParams(
            dimension_semantics=("parallel", "parallel"),
            vmem_limit_bytes=_VMEM_LIMIT_BYTES),
    )(x_flat, scale.reshape(B, C, 1))

    if HW_pad != HW:
        out = out[:, :, :HW]
    return out.reshape(B, C, H, W)


def reference_se(x, w1, b1, w2, b2):
    pooled = jnp.mean(x, axis=(2, 3))                        # (B, C)
    h = jnp.maximum(pooled @ w1.T + b1, 0.0)                 # (B, Cs)
    s = h @ w2.T + b2                                        # (B, C)
    s = jnp.clip(s + 3.0, 0.0, 6.0) / 6.0
    return x * s[:, :, None, None]


def _run_case(key, B, C, H, W, squeeze_factor=4):
    Cs = _make_divisible(C // squeeze_factor, 8)
    k_x, k_w1, k_b1, k_w2, k_b2 = jax.random.split(key, 5)
    x = jax.random.normal(k_x, (B, C, H, W), dtype=jnp.float32)
    w1 = jax.random.normal(k_w1, (Cs, C), dtype=jnp.float32) * 0.1
    b1 = jax.random.normal(k_b1, (Cs,), dtype=jnp.float32) * 0.1
    w2 = jax.random.normal(k_w2, (C, Cs), dtype=jnp.float32) * 0.1
    b2 = jax.random.normal(k_b2, (C,), dtype=jnp.float32) * 0.1

    out = jax.block_until_ready(squeeze_excitation(x, w1, b1, w2, b2))
    ref = reference_se(x, w1, b1, w2, b2)
    assert out.shape == (B, C, H, W)
    assert jnp.allclose(out, ref, atol=1e-5, rtol=1e-5)


if __name__ == "__main__":
    key = jax.random.PRNGKey(0)
    k1, k2 = jax.random.split(key)
    # HW multiple of 128 (no padding path)
    _run_case(k1, B=2, C=16, H=16, W=16)
    # MobileNetV3-like 7x7 spatial -> exercises the lane-padding path
    _run_case(k2, B=2, C=16, H=7, W=7)
    print("KERNEL_OK")
</pallas_src>

<mosaic_0001>
module attributes {stable_mosaic.version = 11 : i64} {
  func.func @_pool_kernel(%arg0: i32, %arg1: i32, %arg2: memref<1x16x256xf32, #tpu.memory_space<vmem>>, %arg3: memref<1x16x1xf32, #tpu.memory_space<vmem>>) attributes {dimension_semantics = [#tpu.dimension_semantics<parallel>, #tpu.dimension_semantics<arbitrary>], iteration_bounds = array<i64: 2, 1>, scalar_prefetch = 0 : i64, scratch_operands = 0 : i64, tpu.core_type = #tpu.core_type<tc>, window_params = [{transform_indices = @transform_0, window_bounds = array<i64: 1, 16, 256>}, {transform_indices = @transform_1, window_bounds = array<i64: 1, 16, 1>}]} {
    %c0_i32 = arith.constant 0 : i32
    %0 = arith.cmpi eq, %arg1, %c0_i32 : i32
    %1 = arith.extui %0 : i1 to i32
    %c0_i32_0 = arith.constant 0 : i32
    %2 = arith.cmpi ne, %1, %c0_i32_0 : i32
    scf.if %2 {
      %cst_9 = arith.constant 0.000000e+00 : f32
      %9 = vector.broadcast %cst_9 : f32 to vector<1x16x1xf32>
      %c0_10 = arith.constant 0 : index
      %c0_11 = arith.constant 0 : index
      %c0_12 = arith.constant 0 : index
      %10 = vector.load %arg3[%c0_10, %c0_11, %c0_12] : memref<1x16x1xf32, #tpu.memory_space<vmem>>, vector<1x16x1xf32>
      tpu.vector_store %arg3[%c0_10, %c0_11, %c0_12], %9 {strides = array<i32>} : memref<1x16x1xf32, #tpu.memory_space<vmem>>, vector<1x16x1xf32>,
    } else {
    }
    %c0 = arith.constant 0 : index
    %c0_1 = arith.constant 0 : index
    %c0_2 = arith.constant 0 : index
    %3 = vector.load %arg3[%c0, %c0_1, %c0_2] : memref<1x16x1xf32, #tpu.memory_space<vmem>>, vector<1x16x1xf32>
    %c0_3 = arith.constant 0 : index
    %c0_4 = arith.constant 0 : index
    %c0_5 = arith.constant 0 : index
    %4 = vector.load %arg2[%c0_3, %c0_4, %c0_5] : memref<1x16x256xf32, #tpu.memory_space<vmem>>, vector<1x16x256xf32>
    %cst = arith.constant dense<0.000000e+00> : vector<1x16xf32>
    %5 = vector.multi_reduction <add>, %4, %cst [2] : vector<1x16x256xf32> to vector<1x16xf32>
    %6 = vector.shape_cast %5 : vector<1x16xf32> to vector<1x16x1xf32>
    %7 = arith.addf %3, %6 : vector<1x16x1xf32>
    %c0_6 = arith.constant 0 : index
    %c0_7 = arith.constant 0 : index
    %c0_8 = arith.constant 0 : index
    %8 = vector.load %arg3[%c0_6, %c0_7, %c0_8] : memref<1x16x1xf32, #tpu.memory_space<vmem>>, vector<1x16x1xf32>
    tpu.vector_store %arg3[%c0_6, %c0_7, %c0_8], %7 {strides = array<i32>} : memref<1x16x1xf32, #tpu.memory_space<vmem>>, vector<1x16x1xf32>,
    return
  }
  func.func @transform_0(%arg0: i32, %arg1: i32) -> (i32, i32, i32) {
    %c0_i32 = arith.constant 0 : i32
    %c0_i32_0 = arith.constant 0 : i32
    return %arg0, %c0_i32, %arg1 : i32, i32, i32
  }
  func.func @transform_1(%arg0: i32, %arg1: i32) -> (i32, i32, i32) {
    %c0_i32 = arith.constant 0 : i32
    %c0_i32_0 = arith.constant 0 : i32
    %c0_i32_1 = arith.constant 0 : i32
    return %arg0, %c0_i32, %c0_i32_0 : i32, i32, i32
  }
}

</mosaic_0001>

<llo_original>
// kernel: tpu_custom_call.1
$region0: #{tpu_custom_call.1}
  #allocation0 [shape = 'u32[]', space=smem, size = 0x4, offset = 0x4, fixed_abs, tag = 'smem constant byte address 0x4 - core index']
  #allocation1 [shape = 'u32[144,128]{1,0:T(1,128)}', space=vmem, size = 0x12000, scoped, tag = 'internal scratch']
  %s0 = inlined_call_operand.hbm [shape: f32[2,16,256], index: 0, kind: input, shape index: {}]
  %s1 = inlined_call_operand.vmem [shape: f32[2,16,1], index: 1, kind: output, shape index: {}]
  %s2 = sld [smem:[#allocation0]]
  $region45: #{tpu_custom_call.1} parent=0
    _
  %s4 = ssub.s32 1, %s2
  %s5 = scalar_select 0, %s4, %s2
  $region1: #{tpu_custom_call.1} parent=0
    #allocation2 [shape = 'u8[32768]{0}', space=vmem, size = 0x8000, scoped, tag = 'input window, operand 0']
    #allocation3 [shape = 's32[2]{0}', space=sflag, size = 0x8, scoped, tag = 'scoped memory for tpu_custom_call.1']
    %6 = vsyncpa [#allocation3], 0
    %s7 = scalar_lea.sflag [#allocation3], 1
    %8 = vsyncpa %s7, 0
    loop: start=0, step=1, limit=4
    $region2: #{tpu_custom_call.1} parent=1 // loop_pre_header
      _
    $region3: #{tpu_custom_call.1} parent=1 // loop_header
      %s10 = sphi 0, %s14
      %p11 = scmp.ge.s32.totalorder %s10, 4
      %s17 = sphi 0, %s29
      %s18 = sphi 0, %s25
      %s19 = sphi 0, %s17
      %s20 = sphi 0, %s18
      %s21 = sphi 0, %s19
      %s22 = sphi 0, %s20
      %s34 = sphi 0, %s36
      %s37 = sphi 0, %s34
      %s38 = sphi 0, %s37
      %s54 = sphi 0, %s38
      %s60 = sphi 0, %s62
      %s63 = sphi 0, %s60
      %s64 = sphi 0, %s63
      %s80 = sphi 0, %s64
    $region4: #{tpu_custom_call.1} parent=1 // loop_header_branch
      %13 = sbr.rel (%p11) target = $region8
    $region5: #{tpu_custom_call.1} parent=1 // loop_body
      %s15 = ssub.s32 %s10, 1
      %s16 = ssub.s32 %s10, 2
      %s23 = sadd.s32 1, %s18
      %p24 = scmp.ge.s32.totalorder %s23, 1
      %s25 = scalar_select %p24, 0, %s23
      %s26 = sadd.s32 1, %s17
      %s27 = scalar_select %p24, %s26, %s17
      %p28 = scmp.ge.s32.totalorder %s27, 2
      %s29 = scalar_select %p28, 0, %s27
      %s30 = ssub.s32 %s17, %s29
      %s31 = ssub.s32 %s18, %s25
      %s32 = sor.u32 %s30, %s31
      %p33 = scmp.eq.s32.totalorder %s32, 0
      %s35 = sadd.s32 %s34, 1
      %s36 = scalar_select %p33, %s34, %s35
      %p39 = pneg %p33
      %p40 = scmp.eq.s32.totalorder %s10, 1
      %p41 = por %p39, %p40
      %p42 = scmp.ne.s32.totalorder %s34, %s37
      %p43 = scmp.eq.s32.totalorder %s10, 0
      %p44 = por %p42, %p43
      %p45 = scmp.ne.s32.totalorder %s34, %s37
      %p46 = scmp.eq.s32.totalorder %s15, 1
      %p47 = por %p45, %p46
      %p48 = scmp.ne.s32.totalorder %s37, %s38
      %p49 = scmp.eq.s32.totalorder %s15, 0
      %p50 = por %p48, %p49
      %p51 = scmp.ne.s32.totalorder %s37, %s38
      %p52 = scmp.eq.s32.totalorder %s16, 1
      %p53 = por %p51, %p52
      %p55 = scmp.ne.s32.totalorder %s38, %s54
      %p56 = scmp.eq.s32.totalorder %s16, 0
      %p57 = por %p55, %p56
      %s58 = ssub.s32 %s17, %s29
      %p59 = scmp.eq.s32.totalorder %s58, 0
      %s61 = sadd.s32 %s60, 1
      %s62 = scalar_select %p59, %s60, %s61
      %p65 = pneg %p59
      %p66 = scmp.eq.s32.totalorder %s10, 1
      %p67 = por %p65, %p66
      %p68 = scmp.ne.s32.totalorder %s60, %s63
      %p69 = scmp.eq.s32.totalorder %s10, 0
      %p70 = por %p68, %p69
      %p71 = scmp.ne.s32.totalorder %s60, %s63
      %p72 = scmp.eq.s32.totalorder %s15, 1
      %p73 = por %p71, %p72
      %p74 = scmp.ne.s32.totalorder %s63, %s64
      %p75 = scmp.eq.s32.totalorder %s15, 0
      %p76 = por %p74, %p75
      %p77 = scmp.ne.s32.totalorder %s63, %s64
      %p78 = scmp.eq.s32.totalorder %s16, 1
      %p79 = por %p77, %p78
      %p81 = scmp.ne.s32.totalorder %s64, %s80
      %p82 = scmp.eq.s32.totalorder %s16, 0
      %p83 = por %p81, %p82
      %p84 = scmp.le.s32.totalorder 1, %s10
      %p85 = scmp.lt.s32.totalorder %s10, 3
      %p86 = pnand %p84, %p85
      %p87 = pneg %p86
      // Predicated region
      $region9: #{tpu_custom_call.1} parent=5 // pred_check
        _
      $region10: #{tpu_custom_call.1} parent=5 // pred_check_branch
        %89 = sbr.rel (%p86) target = $region12
      $region11: #{tpu_custom_call.1} parent=5 // pred_region
        %s90 = ssub.s32 %s10, 1
      $region12: #{tpu_custom_call.1} parent=5 // pred_fallthru
        _
      %p91 = scmp.lt.s32.totalorder %s10, 2
      // Predicated region
      $region13: #{tpu_custom_call.1} parent=5 // pred_check
        %p92 = pneg %p91
      $region14: #{tpu_custom_call.1} parent=5 // pred_check_branch
        %94 = sbr.rel (%p92) target = $region16
      $region15: #{tpu_custom_call.1} parent=5 // pred_region
        // Predicated region
        $region17: #{tpu_custom_call.1} parent=15 // pred_check
          %p95 = pneg %p44
        $region18: #{tpu_custom_call.1} parent=15 // pred_check_branch
          %97 = sbr.rel (%p95) target = $region20
        $region19: #{tpu_custom_call.1} parent=15 // pred_region
          %s98 = sand.u32 %s34, 1
          %s99 = scalar_lea.sflag [#allocation3], %s98
          %s100 = sand.u32 %s34, 1
          %s101 = smul.addr %s100, 32
          %s102 = scalar_lea.vmem [#allocation2], %s101
          %s103 = smul.u32 2, %s18
          %s105 = ssub.s32 512, 512
          %106 = vsyncadd %s99, %s105
          %s107 = smul.addr %s17, 4
          %s108 = sadd.s32 %s103, %s107
          %s109 = smul.addr %s108, 128
          %s110 = scalar_lea.hbm %s0, %s109
          %s111 = sshll.u32 %s102, 4
          %s112 = int_to_ptr.vmem [resolvable:$true] %s111
          %117 = dma.hbm_to_vmem [thread:$0]  %s110, 512, %s112, %s99, 256, 256, 16
        $region20: #{tpu_custom_call.1} parent=15 // pred_fallthru
          _
      $region16: #{tpu_custom_call.1} parent=5 // pred_fallthru
        _
      %p118 = scmp.le.s32.totalorder 1, %s10
      %p119 = scmp.lt.s32.totalorder %s10, 3
      %p120 = pnand %p118, %p119
      %p121 = pneg %p120
      // Predicated region
      $region21: #{tpu_custom_call.1} parent=5 // pred_check
        _
      $region22: #{tpu_custom_call.1} parent=5 // pred_check_branch
        %123 = sbr.rel (%p120) target = $region24
      $region23: #{tpu_custom_call.1} parent=5 // pred_region
        %s124 = ssub.s32 %s10, 1
        %s125 = sand.u32 %s37, 1
        %s126 = scalar_lea.sflag [#allocation3], %s125
        %s127 = sand.u32 %s37, 1
        %s128 = smul.addr %s127, 32
        %s129 = scalar_lea.vmem [#allocation2], %s128
        // Predicated region
        $region25: #{tpu_custom_call.1} parent=23 // pred_check
          %p130 = pneg %p50
        $region26: #{tpu_custom_call.1} parent=23 // pred_check_branch
          %132 = sbr.rel (%p130) target = $region28
        $region27: #{tpu_custom_call.1} parent=23 // pred_region
          %133 = dma.done %s126, 512
        $region28: #{tpu_custom_call.1} parent=23 // pred_fallthru
          _
        %s134 = sand.u32 %s37, 1
        %s135 = scalar_lea.sflag [#allocation3], %s134
        %s136 = sand.u32 %s37, 1
        %s137 = smul.addr %s136, 32
        %s138 = scalar_lea.vmem [#allocation2], %s137
        %p139 = pneg %p50
        %p140 = pneg %p47
        %p141 = pneg %p76
        %p142 = pneg %p73
        %p143 = scmp.lt.s32.totalorder %s19, 1
        %s144 = scalar_select %p143, %s19, 1
        %s145 = smul.addr %s144, 2
        %s146 = smul.addr %s145, 8
        %s147 = scalar_lea.vmem %s1, %s146
        %s148 = smul.u32 2, %s20
        %p149 = scmp.lt.s32.totalorder %s19, 1
        %s150 = scalar_select %p149, %s19, 1
        %s151 = smul.addr %s150, 2
        %s152 = smul.addr %s151, 8
        %s153 = scalar_lea.vmem %s1, %s152
        %p154 = scmp.eq.s32.totalorder %s20, 0
        // Predicated region
        $region29: #{tpu_custom_call.1} parent=23 // pred_check
          %p155 = pneg %p154
        $region30: #{tpu_custom_call.1} parent=23 // pred_check_branch
          %157 = sbr.rel (%p155) target = $region32
        $region31: #{tpu_custom_call.1} parent=23 // pred_region
          %vm158 = vcmask 7168
          %159 = vst.msk [vmem:[%s153] sm:$0xff] %vm158, 0.0
          %160 = vst.msk [vmem:[%s153 + $0x8] sm:$0xff] %vm158, 0.0
        $region32: #{tpu_custom_call.1} parent=23 // pred_fallthru
          _
        %v161 = vld [vmem:[%s153] sm:$0xff]
        %v162 = vld [vmem:[%s153 + $0x8] sm:$0xff]
        %v163 = vld [vmem:[%s129] sm:$0xff]
        %v164 = vld [vmem:[%s129 + $0x8] sm:$0xff]
        %v165 = vld [vmem:[%s129 + $0x10] sm:$0xff]
        %v166 = vld [vmem:[%s129 + $0x18] sm:$0xff]
        %v167 = vadd.f32 %v163, %v164
        %168 = vadd.xlane.f32.xlu0 %v167
        %v169 = vpop.xlane.xlu0 %168
        %v170 = vadd.f32 %v165, %v166
        %171 = vadd.xlane.f32.xlu0 %v170
        %v172 = vpop.xlane.xlu0 %171
        %v173 = vadd.f32 %v161, %v169
        %v174 = vadd.f32 %v162, %v172
        %vm175 = vcmask 7168
        %176 = vst.msk [vmem:[%s153] sm:$0xff] %vm175, %v173
        %177 = vst.msk [vmem:[%s153 + $0x8] sm:$0xff] %vm175, %v174
        %p178 = scmp.lt.s32.totalorder %s19, 1
        %s179 = scalar_select %p178, %s19, 1
        %s180 = smul.addr %s179, 2
        %s181 = smul.addr %s180, 8
        %s182 = scalar_lea.vmem %s1, %s181
        // Predicated region
        $region33: #{tpu_custom_call.1} parent=23 // pred_check
          %p183 = pneg %p73
        $region34: #{tpu_custom_call.1} parent=23 // pred_check_branch
          %185 = sbr.rel (%p183) target = $region36
        $region35: #{tpu_custom_call.1} parent=23 // pred_region
          _
        $region36: #{tpu_custom_call.1} parent=23 // pred_fallthru
          _
      $region24: #{tpu_custom_call.1} parent=5 // pred_fallthru
        _
      %p186 = scmp.le.s32.totalorder 2, %s10
      // Predicated region
      $region37: #{tpu_custom_call.1} parent=5 // pred_check
        %p187 = pneg %p186
      $region38: #{tpu_custom_call.1} parent=5 // pred_check_branch
        %189 = sbr.rel (%p187) target = $region40
      $region39: #{tpu_custom_call.1} parent=5 // pred_region
        %s190 = ssub.s32 %s10, 2
        // Predicated region
        $region41: #{tpu_custom_call.1} parent=39 // pred_check
          %p191 = pneg %p79
        $region42: #{tpu_custom_call.1} parent=39 // pred_check_branch
          %193 = sbr.rel (%p191) target = $region44
        $region43: #{tpu_custom_call.1} parent=39 // pred_region
          %p194 = scmp.lt.s32.totalorder %s21, 1
          %s195 = scalar_select %p194, %s21, 1
          %s196 = smul.addr %s195, 2
          %s197 = smul.addr %s196, 8
          %s198 = scalar_lea.vmem %s1, %s197
        $region44: #{tpu_custom_call.1} parent=39 // pred_fallthru
          _
      $region40: #{tpu_custom_call.1} parent=5 // pred_fallthru
        _
    $region6: #{tpu_custom_call.1} parent=1 // loop_footer
      %s14 = sadd.s32 1, %s10
    $region7: #{tpu_custom_call.1} parent=1 // loop_footer_branch
      %9 = sbr.rel target = $region3
    $region8: #{tpu_custom_call.1} parent=1 // loop_exit
      _
    %199 = vsyncpa [#allocation3], 1
    %s200 = scalar_lea.sflag [#allocation3], 1
    %201 = vsyncpa %s200, 1

</llo_original>
